<compile_context>
chip_gen: v6e
topology: v6e:2x2x1
jax: 0.10.0
libtpu: 0.0.40
codegen_flags: <defaults>
</compile_context>

<pallas_src>
import jax
import jax.numpy as jnp
import numpy as np
from jax import lax
from jax.experimental import pallas as pl
from jax.experimental.pallas import tpu as pltpu  # noqa: F401  (TPU backend)

# Problem sizes (small, consistent with the module's forward).
N = 16             # num_of_vertices (== A.shape[0])
INPUT_DIM = 8      # per-timestep feature dim (BatchNorm1d(input_dim))
OUTPUT_DIM = 8     # GCN / conv channels
TEMPORAL = 4       # temporal steps
IN_CHANNELS = INPUT_DIM * TEMPORAL
EPS = 1e-5
LEAKY = 0.01

TN = TEMPORAL * N              # 64 stacked rows (time-major blocks of 16 vertices)
D2 = 2 * INPUT_DIM             # 16 (theta output width)
LIN_W = D2 + OUTPUT_DIM        # 24 ([w1 | w2] lane width)
TC = TEMPORAL * OUTPUT_DIM     # 32 (wide slab lane width)

# Block-diagonal averaging matrix: Avg64 @ X = per-timestep (16-row-block) mean
# of X, already broadcast back to all 64 rows.  Pure numpy constant.
_AVG64 = np.kron(np.eye(TEMPORAL, dtype=np.float32),
                 np.full((N, N), 1.0 / N, dtype=np.float32))

# Delta[k, t_in, t_out] = 1  iff  t_in == t_out + k - 1   (3-tap conv, pad 1).
_DELTA = np.zeros((3, TEMPORAL, TEMPORAL), np.float32)
for _k in range(3):
    for _to in range(TEMPORAL):
        _ti = _to + _k - 1
        if 0 <= _ti < TEMPORAL:
            _DELTA[_k, _ti, _to] = 1.0

# Row offsets inside the packed weight/vector slab (48, 32).
_ROW_W12 = 0                    # rows  0:8   -> [w1 | w2]              (8, 24)
_ROW_WCP = INPUT_DIM            # rows  8:40  -> fused conv+perm weight (32, 32)
_ROW_VEC = INPUT_DIM + TC       # rows 40:44  -> gamma, beta, [b1|b2], bias_big


# -----------------------------------------------------------------------------
# Single fused kernel: BN -> batched linears -> block-diagonal dynamic graph ->
# sym-normalized propagation -> relu -> fused temporal conv + output permute.
# -----------------------------------------------------------------------------
def tigcn_kernel(h_ref, m_ref, wv_ref, out_ref):
    # Packed operand views (static slices of the 3 DMA slabs).
    h = h_ref[...]                                    # (64, 8)  time-major stacked
    avg = m_ref[0:TN, :]                              # (64, 64) block-diag 1/16
    mask_big = m_ref[TN:2 * TN, :]                    # (64, 64) block-diag mask

    w12 = wv_ref[_ROW_W12:_ROW_W12 + INPUT_DIM, 0:LIN_W]          # (8, 24)
    wcp = wv_ref[_ROW_WCP:_ROW_WCP + TC, :]                       # (32, 32)
    gamma = wv_ref[_ROW_VEC:_ROW_VEC + 1, 0:INPUT_DIM]            # (1, 8)
    beta = wv_ref[_ROW_VEC + 1:_ROW_VEC + 2, 0:INPUT_DIM]         # (1, 8)
    b12 = wv_ref[_ROW_VEC + 2:_ROW_VEC + 3, 0:LIN_W]              # (1, 24)
    bias_big = wv_ref[_ROW_VEC + 3:_ROW_VEC + 4, :]               # (1, 32)

    # ---- BatchNorm1d (training-mode batch stats) for all timesteps at once ----
    hh2 = jnp.concatenate([h, h * h], axis=1)                     # (64, 16)
    stats = jnp.dot(avg, hh2, preferred_element_type=jnp.float32) # (64, 16)
    mean = stats[:, 0:INPUT_DIM]
    var = stats[:, INPUT_DIM:2 * INPUT_DIM] - mean * mean
    hn = (h - mean) * lax.rsqrt(var + EPS) * gamma + beta         # (64, 8)

    # ---- theta / out linears, batched over all timesteps (one push) ----
    ho = jnp.dot(hn, w12, preferred_element_type=jnp.float32) + b12   # (64, 24)
    hx = ho[:, 0:D2]                                              # (64, 16)
    hout = ho[:, D2:LIN_W]                                        # (64, 8)

    # ---- block-diagonal dynamic graph + symmetric normalization ----
    gram = lax.dot_general(hx, hx, (((1,), (1,)), ((), ())),
                           preferred_element_type=jnp.float32)    # (64, 64)
    b_adj = jnp.maximum(jax.nn.sigmoid(gram), 0.1) * mask_big     # off-blocks -> 0
    # A = b_adj + I ;  d = rowsum(A)^-1/2 ;  out = d * (A @ (d * hout))
    d = lax.rsqrt(jnp.sum(b_adj, axis=1, keepdims=True) + 1.0)    # (64, 1)
    sh = d * hout
    prop = jnp.dot(b_adj, sh, preferred_element_type=jnp.float32) + sh
    # relu(LeakyReLU_{0.01}(x)) == relu(x): collapse the two activations.
    conv_in = jnp.maximum(d * prop, 0.0)                          # (64, 8)

    # ---- stacked (T*N, C) -> wide (N, T*C), fused conv + output permute ----
    conv_wide = jnp.concatenate(
        [conv_in[t * N:(t + 1) * N, :] for t in range(TEMPORAL)], axis=1)  # (16, 32)
    y = jnp.dot(conv_wide, wcp, preferred_element_type=jnp.float32) + bias_big
    out_ref[...] = jnp.maximum(y, 0.0)                            # final F.relu


# -----------------------------------------------------------------------------
# Wrapper: layout plumbing + constant packing only (tiny tensors), one call.
# -----------------------------------------------------------------------------
def tigcn_forward(H, mask, gamma, beta, w1, b1, w2, b2, wconv, bconv):
    # Stacked time-major input: (N, D*T) -> (N, D, T) -> (T, N, D) -> (T*N, D).
    h64 = jnp.transpose(H.reshape(N, INPUT_DIM, TEMPORAL),
                        (2, 0, 1)).reshape(TN, INPUT_DIM)

    # Constants slab (128, 64): [Avg64 ; block-diagonal mask].
    mask_big = jnp.kron(jnp.eye(TEMPORAL, dtype=jnp.float32), mask)
    m_slab = jnp.concatenate([jnp.asarray(_AVG64), mask_big], axis=0)

    # Fused temporal-conv + output-permutation weight (32, 32):
    #   Wcp[t_in*C + c_in, c*T + t_out] = wconv[c, c_in, 0, t_in - t_out + 1]
    wcp = jnp.einsum('cik,kab->aicb', wconv[:, :, 0, :],
                     jnp.asarray(_DELTA)).reshape(TC, TC)
    bias_big = jnp.repeat(bconv, TEMPORAL)                        # (32,) channel-major

    def row(v, width=TC):
        v = jnp.reshape(v, (1, -1))
        return jnp.pad(v, ((0, 0), (0, width - v.shape[1])))

    wv_slab = jnp.concatenate([
        jnp.pad(jnp.concatenate([w1, w2], axis=1), ((0, 0), (0, TC - LIN_W))),  # (8, 32)
        wcp,                                                                    # (32, 32)
        row(gamma), row(beta),
        row(jnp.concatenate([jnp.reshape(b1, (-1,)), jnp.reshape(b2, (-1,))])),
        row(bias_big),
        jnp.zeros((4, TC), jnp.float32),                                        # pad -> 48 rows
    ], axis=0)

    # TODO(synk): if a batch of graphs is ever processed, add a leading
    # "parallel" grid axis over the batch so both v7x TensorCores are used and
    # launch/DMA overhead is amortized.
    return pl.pallas_call(
        tigcn_kernel,
        out_shape=jax.ShapeDtypeStruct((N, OUTPUT_DIM * TEMPORAL), jnp.float32),
    )(h64, m_slab, wv_slab)


# -----------------------------------------------------------------------------
# Pure-JAX reference (mirrors the PyTorch forward semantics)
# -----------------------------------------------------------------------------
def reference(H, mask, gamma, beta, w1, b1, w2, b2, wconv, bconv):
    Hr = H.reshape(N, INPUT_DIM, TEMPORAL)
    I = jnp.eye(N, dtype=jnp.float32)
    outs = []
    for t in range(TEMPORAL):
        HH = Hr[:, :, t]
        mean = HH.mean(0)
        var = ((HH - mean) ** 2).mean(0)
        HHn = (HH - mean) / jnp.sqrt(var + EPS) * gamma[0] + beta[0]
        Hx = HHn @ w1 + b1[0]
        S = jax.nn.sigmoid(Hx @ Hx.T)
        A = jnp.maximum(S, 0.1) * mask + I
        d = A.sum(1) ** -0.5
        A_hat = jnp.diag(d) @ A @ jnp.diag(d)
        out = A_hat @ (HHn @ w2 + b2[0])
        out = jnp.where(out >= 0, out, LEAKY * out)               # LeakyReLU(0.01)
        outs.append(out[:, :, None])
    conv_in = jnp.maximum(jnp.concatenate(outs, axis=-1), 0.0)    # (N, C, T)
    xp = jnp.pad(conv_in, ((0, 0), (0, 0), (1, 1)))
    y = sum(jnp.einsum('nct,oc->not', xp[:, :, k:k + TEMPORAL], wconv[:, :, 0, k])
            for k in range(3)) + bconv[None, :, None]
    y = jnp.maximum(y, 0.0)
    return y.reshape(N, OUTPUT_DIM * TEMPORAL)


if __name__ == "__main__":
    key = jax.random.PRNGKey(0)
    ks = jax.random.split(key, 10)

    # Inputs
    H = jax.random.normal(ks[0], (N, IN_CHANNELS), jnp.float32)
    A0 = (jax.random.uniform(ks[1], (N, N)) > 0.5).astype(jnp.float32)
    A0 = jnp.maximum(A0, A0.T)                   # symmetric adjacency
    mask = jnp.ceil(A0 * 1e-5)                   # self.mask

    # Deterministic parameter init (shapes from __init__)
    gamma = jax.random.normal(ks[2], (1, INPUT_DIM), jnp.float32) * 0.1 + 1.0  # BN weight
    beta = jax.random.normal(ks[3], (1, INPUT_DIM), jnp.float32) * 0.1         # BN bias
    w1 = jax.random.normal(ks[4], (INPUT_DIM, 2 * INPUT_DIM), jnp.float32) * 0.2
    b1 = jax.random.normal(ks[5], (1, 2 * INPUT_DIM), jnp.float32) * 0.1
    w2 = jax.random.normal(ks[6], (INPUT_DIM, OUTPUT_DIM), jnp.float32) * 0.2
    b2 = jax.random.normal(ks[7], (1, OUTPUT_DIM), jnp.float32) * 0.1
    wconv = jax.random.normal(ks[8], (OUTPUT_DIM, OUTPUT_DIM, 1, 3), jnp.float32) * 0.2
    bconv = jax.random.normal(ks[9], (OUTPUT_DIM,), jnp.float32) * 0.1

    fwd = jax.jit(tigcn_forward)
    out = fwd(H, mask, gamma, beta, w1, b1, w2, b2, wconv, bconv)
    out = jax.block_until_ready(out)

    ref = reference(H, mask, gamma, beta, w1, b1, w2, b2, wconv, bconv)
    np.testing.assert_allclose(np.asarray(out), np.asarray(ref), rtol=1e-4, atol=1e-4)

    print("KERNEL_OK")
</pallas_src>

<mosaic_0001>
module attributes {stable_mosaic.version = 11 : i64} {
  func.func @tigcn_kernel(%arg0: memref<64x8xf32, #tpu.memory_space<vmem>>, %arg1: memref<128x64xf32, #tpu.memory_space<vmem>>, %arg2: memref<48x32xf32, #tpu.memory_space<vmem>>, %arg3: memref<16x32xf32, #tpu.memory_space<vmem>>) attributes {dimension_semantics = [], scalar_prefetch = 0 : i64, scratch_operands = 0 : i64, tpu.core_type = #tpu.core_type<tc>} {
    %c0 = arith.constant 0 : index
    %c0_0 = arith.constant 0 : index
    %0 = vector.load %arg0[%c0, %c0_0] : memref<64x8xf32, #tpu.memory_space<vmem>>, vector<64x8xf32>
    %c0_1 = arith.constant 0 : index
    %c0_2 = arith.constant 0 : index
    %1 = vector.load %arg1[%c0_1, %c0_2] : memref<128x64xf32, #tpu.memory_space<vmem>>, vector<64x64xf32>
    %c64 = arith.constant 64 : index
    %c0_3 = arith.constant 0 : index
    %2 = vector.load %arg1[%c64, %c0_3] : memref<128x64xf32, #tpu.memory_space<vmem>>, vector<64x64xf32>
    %c0_4 = arith.constant 0 : index
    %c0_5 = arith.constant 0 : index
    %3 = vector.load %arg2[%c0_4, %c0_5] : memref<48x32xf32, #tpu.memory_space<vmem>>, vector<8x24xf32>
    %c8 = arith.constant 8 : index
    %c0_6 = arith.constant 0 : index
    %4 = vector.load %arg2[%c8, %c0_6] : memref<48x32xf32, #tpu.memory_space<vmem>>, vector<32x32xf32>
    %c40 = arith.constant 40 : index
    %c0_7 = arith.constant 0 : index
    %5 = vector.load %arg2[%c40, %c0_7] : memref<48x32xf32, #tpu.memory_space<vmem>>, vector<1x8xf32>
    %c41 = arith.constant 41 : index
    %c0_8 = arith.constant 0 : index
    %6 = vector.load %arg2[%c41, %c0_8] : memref<48x32xf32, #tpu.memory_space<vmem>>, vector<1x8xf32>
    %c42 = arith.constant 42 : index
    %c0_9 = arith.constant 0 : index
    %7 = vector.load %arg2[%c42, %c0_9] : memref<48x32xf32, #tpu.memory_space<vmem>>, vector<1x24xf32>
    %c43 = arith.constant 43 : index
    %c0_10 = arith.constant 0 : index
    %8 = vector.load %arg2[%c43, %c0_10] : memref<48x32xf32, #tpu.memory_space<vmem>>, vector<1x32xf32>
    %9 = arith.mulf %0, %0 : vector<64x8xf32>
    %10 = tpu.concatenate %0, %9 in 1 : vector<64x8xf32>, vector<64x8xf32> -> vector<64x16xf32>
    %cst = arith.constant dense<0.000000e+00> : vector<64x16xf32>
    %11 = tpu.matmul %1, %10, %cst {dimension_numbers = #tpu.dot_dimension_numbers<[1], [0], [0], [1], [0, 0, 1, 1], [], []>} : vector<64x64xf32>, vector<64x16xf32>, vector<64x16xf32> -> vector<64x16xf32>
    %12 = vector.extract_strided_slice %11 {offsets = [0, 0], sizes = [64, 8], strides = [1, 1]} : vector<64x16xf32> to vector<64x8xf32>
    %13 = vector.extract_strided_slice %11 {offsets = [0, 8], sizes = [64, 8], strides = [1, 1]} : vector<64x16xf32> to vector<64x8xf32>
    %14 = arith.mulf %12, %12 : vector<64x8xf32>
    %15 = arith.subf %13, %14 : vector<64x8xf32>
    %16 = arith.subf %0, %12 : vector<64x8xf32>
    %cst_11 = arith.constant 9.99999974E-6 : f32
    %17 = vector.broadcast %cst_11 : f32 to vector<64x8xf32>
    %18 = arith.addf %15, %17 : vector<64x8xf32>
    %19 = math.rsqrt %18 : vector<64x8xf32>
    %20 = arith.mulf %16, %19 : vector<64x8xf32>
    %21 = vector.broadcast %5 : vector<1x8xf32> to vector<64x8xf32>
    %22 = arith.mulf %20, %21 : vector<64x8xf32>
    %23 = vector.broadcast %6 : vector<1x8xf32> to vector<64x8xf32>
    %24 = arith.addf %22, %23 : vector<64x8xf32>
    %cst_12 = arith.constant dense<0.000000e+00> : vector<64x24xf32>
    %25 = tpu.matmul %24, %3, %cst_12 {dimension_numbers = #tpu.dot_dimension_numbers<[1], [0], [0], [1], [0, 0, 1, 1], [], []>} : vector<64x8xf32>, vector<8x24xf32>, vector<64x24xf32> -> vector<64x24xf32>
    %26 = vector.broadcast %7 : vector<1x24xf32> to vector<64x24xf32>
    %27 = arith.addf %25, %26 : vector<64x24xf32>
    %28 = vector.extract_strided_slice %27 {offsets = [0, 0], sizes = [64, 16], strides = [1, 1]} : vector<64x24xf32> to vector<64x16xf32>
    %29 = vector.extract_strided_slice %27 {offsets = [0, 16], sizes = [64, 8], strides = [1, 1]} : vector<64x24xf32> to vector<64x8xf32>
    %cst_13 = arith.constant dense<0.000000e+00> : vector<64x64xf32>
    %30 = tpu.matmul %28, %28, %cst_13 {dimension_numbers = #tpu.dot_dimension_numbers<[1], [1], [0], [0], [0, 0, 1, 0], [], []>} : vector<64x16xf32>, vector<64x16xf32>, vector<64x64xf32> -> vector<64x64xf32>
    %31 = arith.negf %30 : vector<64x64xf32>
    %32 = math.exp %31 : vector<64x64xf32>
    %cst_14 = arith.constant 1.000000e+00 : f32
    %33 = vector.broadcast %cst_14 : f32 to vector<64x64xf32>
    %34 = arith.addf %33, %32 : vector<64x64xf32>
    %35 = arith.divf %33, %34 : vector<64x64xf32>
    %cst_15 = arith.constant 1.000000e-01 : f32
    %36 = vector.broadcast %cst_15 : f32 to vector<64x64xf32>
    %37 = arith.maximumf %35, %36 : vector<64x64xf32>
    %38 = arith.mulf %37, %2 : vector<64x64xf32>
    %cst_16 = arith.constant dense<0.000000e+00> : vector<64xf32>
    %39 = vector.multi_reduction <add>, %38, %cst_16 [1] : vector<64x64xf32> to vector<64xf32>
    %40 = vector.shape_cast %39 : vector<64xf32> to vector<64x1xf32>
    %cst_17 = arith.constant 1.000000e+00 : f32
    %41 = vector.broadcast %cst_17 : f32 to vector<64x1xf32>
    %42 = arith.addf %40, %41 : vector<64x1xf32>
    %43 = math.rsqrt %42 : vector<64x1xf32>
    %44 = vector.broadcast %43 : vector<64x1xf32> to vector<64x8xf32>
    %45 = arith.mulf %44, %29 : vector<64x8xf32>
    %cst_18 = arith.constant dense<0.000000e+00> : vector<64x8xf32>
    %46 = tpu.matmul %38, %45, %cst_18 {dimension_numbers = #tpu.dot_dimension_numbers<[1], [0], [0], [1], [0, 0, 1, 1], [], []>} : vector<64x64xf32>, vector<64x8xf32>, vector<64x8xf32> -> vector<64x8xf32>
    %47 = arith.addf %46, %45 : vector<64x8xf32>
    %48 = vector.broadcast %43 : vector<64x1xf32> to vector<64x8xf32>
    %49 = arith.mulf %48, %47 : vector<64x8xf32>
    %cst_19 = arith.constant 0.000000e+00 : f32
    %50 = vector.broadcast %cst_19 : f32 to vector<64x8xf32>
    %51 = arith.maximumf %49, %50 : vector<64x8xf32>
    %52 = vector.extract_strided_slice %51 {offsets = [0, 0], sizes = [16, 8], strides = [1, 1]} : vector<64x8xf32> to vector<16x8xf32>
    %53 = vector.extract_strided_slice %51 {offsets = [16, 0], sizes = [16, 8], strides = [1, 1]} : vector<64x8xf32> to vector<16x8xf32>
    %54 = vector.extract_strided_slice %51 {offsets = [32, 0], sizes = [16, 8], strides = [1, 1]} : vector<64x8xf32> to vector<16x8xf32>
    %55 = vector.extract_strided_slice %51 {offsets = [48, 0], sizes = [16, 8], strides = [1, 1]} : vector<64x8xf32> to vector<16x8xf32>
    %56 = tpu.concatenate %52, %53, %54, %55 in 1 : vector<16x8xf32>, vector<16x8xf32>, vector<16x8xf32>, vector<16x8xf32> -> vector<16x32xf32>
    %cst_20 = arith.constant dense<0.000000e+00> : vector<16x32xf32>
    %57 = tpu.matmul %56, %4, %cst_20 {dimension_numbers = #tpu.dot_dimension_numbers<[1], [0], [0], [1], [0, 0, 1, 1], [], []>} : vector<16x32xf32>, vector<32x32xf32>, vector<16x32xf32> -> vector<16x32xf32>
    %58 = vector.broadcast %8 : vector<1x32xf32> to vector<16x32xf32>
    %59 = arith.addf %57, %58 : vector<16x32xf32>
    %cst_21 = arith.constant 0.000000e+00 : f32
    %60 = vector.broadcast %cst_21 : f32 to vector<16x32xf32>
    %61 = arith.maximumf %59, %60 : vector<16x32xf32>
    %c0_22 = arith.constant 0 : index
    %c0_23 = arith.constant 0 : index
    %62 = vector.load %arg3[%c0_22, %c0_23] : memref<16x32xf32, #tpu.memory_space<vmem>>, vector<16x32xf32>
    tpu.vector_store %arg3[%c0_22, %c0_23], %61 {strides = array<i32>} : memref<16x32xf32, #tpu.memory_space<vmem>>, vector<16x32xf32>,
    return
  }
}

</mosaic_0001>

<llo_original>
// kernel: tigcn_forward.1
$region0: #{tigcn_forward.1}
  #allocation0 [shape = 'u32[]', space=smem, size = 0x4, offset = 0x4, fixed_abs, tag = 'smem constant byte address 0x4 - core index']
  #allocation1 [shape = 'u32[144,128]{1,0:T(1,128)}', space=vmem, size = 0x12000, scoped, tag = 'internal scratch']
  %s0 = inlined_call_operand.vmem [shape: f32[64,8], index: 0, kind: input, shape index: {}]
  %s1 = inlined_call_operand.vmem [shape: f32[128,64], index: 1, kind: input, shape index: {}]
  %s2 = inlined_call_operand.vmem [shape: f32[48,32], index: 2, kind: input, shape index: {}]
  %s3 = inlined_call_operand.hbm [shape: f32[16,32], index: 3, kind: output, shape index: {}]
  %s4 = sld [smem:[#allocation0]]
  $region22: #{tigcn_forward.1} parent=0
    _
  %s6 = ssub.s32 1, %s4
  %s7 = scalar_select 0, %s6, %s4
  $region1: #{tigcn_forward.1} parent=0
    #allocation2 [shape = 'u8[8192]{0}', space=vmem, size = 0x2000, scoped, tag = 'output window, operand 0, single buffered']
    #allocation3 [shape = 's32[1]{0}', space=sflag, size = 0x4, scoped, tag = 'scoped memory for tigcn_forward.1']
    %8 = vsyncpa [#allocation3], 0
    // Predicated region
    $region2: #{tigcn_forward.1} parent=1 // pred_check
      _
    $region3: #{tigcn_forward.1} parent=1 // pred_check_branch
      %10 = sbr.rel (0) target = $region5
    $region4: #{tigcn_forward.1} parent=1 // pred_region
      _
    $region5: #{tigcn_forward.1} parent=1 // pred_fallthru
      _
    // Predicated region
    $region6: #{tigcn_forward.1} parent=1 // pred_check
      _
    $region7: #{tigcn_forward.1} parent=1 // pred_check_branch
      %12 = sbr.rel (0) target = $region9
    $region8: #{tigcn_forward.1} parent=1 // pred_region
      _
    $region9: #{tigcn_forward.1} parent=1 // pred_fallthru
      _
    // Predicated region
    $region10: #{tigcn_forward.1} parent=1 // pred_check
      _
    $region11: #{tigcn_forward.1} parent=1 // pred_check_branch
      %14 = sbr.rel (0) target = $region13
    $region12: #{tigcn_forward.1} parent=1 // pred_region
      _
    $region13: #{tigcn_forward.1} parent=1 // pred_fallthru
      _
    %v15 = vld [vmem:[%s0] sm:$0xff]
    %v16 = vld [vmem:[%s0 + $0x8] sm:$0xff]
    %v17 = vld [vmem:[%s0 + $0x10] sm:$0xff]
    %v18 = vld [vmem:[%s0 + $0x18] sm:$0xff]
    %v19 = vld [vmem:[%s0 + $0x20] sm:$0xff]
    %v20 = vld [vmem:[%s0 + $0x28] sm:$0xff]
    %v21 = vld [vmem:[%s0 + $0x30] sm:$0xff]
    %v22 = vld [vmem:[%s0 + $0x38] sm:$0xff]
    %v23 = vld [vmem:[%s1] sm:$0xff]
    %v24 = vld [vmem:[%s1 + $0x8] sm:$0xff]
    %v25 = vld [vmem:[%s1 + $0x10] sm:$0xff]
    %v26 = vld [vmem:[%s1 + $0x18] sm:$0xff]
    %v27 = vld [vmem:[%s1 + $0x20] sm:$0xff]
    %v28 = vld [vmem:[%s1 + $0x28] sm:$0xff]
    %v29 = vld [vmem:[%s1 + $0x30] sm:$0xff]
    %v30 = vld [vmem:[%s1 + $0x38] sm:$0xff]
    %v31 = vld [vmem:[%s1 + $0x40] sm:$0xff]
    %v32 = vld [vmem:[%s1 + $0x48] sm:$0xff]
    %v33 = vld [vmem:[%s1 + $0x50] sm:$0xff]
    %v34 = vld [vmem:[%s1 + $0x58] sm:$0xff]
    %v35 = vld [vmem:[%s1 + $0x60] sm:$0xff]
    %v36 = vld [vmem:[%s1 + $0x68] sm:$0xff]
    %v37 = vld [vmem:[%s1 + $0x70] sm:$0xff]
    %v38 = vld [vmem:[%s1 + $0x78] sm:$0xff]
    %v39 = vld [vmem:[%s2] sm:$0xff]
    %v40 = vld [vmem:[%s2 + $0x8] sm:$0xff]
    %v41 = vld [vmem:[%s2 + $0x10] sm:$0xff]
    %v42 = vld [vmem:[%s2 + $0x18] sm:$0xff]
    %v43 = vld [vmem:[%s2 + $0x20] sm:$0xff]
    %v44 = vld [vmem:[%s2 + $0x28] sm:$0x1]
    %v45 = vld [vmem:[%s2 + $0x29] sm:$0x1]
    %v46 = vld [vmem:[%s2 + $0x2a] sm:$0x1]
    %v47 = vld [vmem:[%s2 + $0x2b] sm:$0x1]
    %v48 = vmul.f32 %v15, %v15
    %v49 = vmul.f32 %v16, %v16
    %v50 = vmul.f32 %v17, %v17
    %v51 = vmul.f32 %v18, %v18
    %v52 = vmul.f32 %v19, %v19
    %v53 = vmul.f32 %v20, %v20
    %v54 = vmul.f32 %v21, %v21
    %v55 = vmul.f32 %v22, %v22
    %64 = vrot.lane.b32.xlu0 %v48, 8
    %v65 = vpop.permute.xlu0 %64
    %66 = vrot.lane.b32.xlu0 %v49, 8
    %v67 = vpop.permute.xlu0 %66
    %68 = vrot.lane.b32.xlu0 %v50, 8
    %v69 = vpop.permute.xlu0 %68
    %70 = vrot.lane.b32.xlu0 %v51, 8
    %v71 = vpop.permute.xlu0 %70
    %72 = vrot.lane.b32.xlu0 %v52, 8
    %v73 = vpop.permute.xlu0 %72
    %74 = vrot.lane.b32.xlu0 %v53, 8
    %v75 = vpop.permute.xlu0 %74
    %76 = vrot.lane.b32.xlu0 %v54, 8
    %v77 = vpop.permute.xlu0 %76
    %78 = vrot.lane.b32.xlu0 %v55, 8
    %v79 = vpop.permute.xlu0 %78
    %vm88 = vcmask 64512
    %v89 = vsel %vm88, %v15, %v65
    %v90 = vsel %vm88, %v16, %v67
    %v91 = vsel %vm88, %v17, %v69
    %v92 = vsel %vm88, %v18, %v71
    %v93 = vsel %vm88, %v19, %v73
    %v94 = vsel %vm88, %v20, %v75
    %v95 = vsel %vm88, %v21, %v77
    %v96 = vsel %vm88, %v22, %v79
    %vm97 = vcmask 523264
    %v99 = vsel %vm97, %v23, 0
    %v102 = vsel %vm97, %v24, 0
    %v105 = vsel %vm97, %v25, 0
    %v108 = vsel %vm97, %v26, 0
    %v111 = vsel %vm97, %v27, 0
    %v114 = vsel %vm97, %v28, 0
    %v117 = vsel %vm97, %v29, 0
    %v120 = vsel %vm97, %v30, 0
    %122 = vmatprep.subr.mxu0 0.0
    %123 = vmatpush1.msra.mxu0 0.0
    %124 = vmatprep.subr.mxu0 0.0
    %125 = vmatpush1.msra.mxu0 0.0
    %126 = vmatprep.subr.mxu0 0.0
    %127 = vmatpush1.msra.mxu0 0.0
    %128 = vmatprep.subr.mxu0 0.0
    %129 = vmatpush1.msra.mxu0 0.0
    %130 = vmatprep.subr.mxu0 0.0
    %131 = vmatpush1.msra.mxu0 0.0
    %132 = vmatprep.subr.mxu0 0.0
    %133 = vmatpush1.msra.mxu0 0.0
    %134 = vmatprep.subr.mxu0 0.0
    %135 = vmatpush1.msra.mxu0 0.0
    %136 = vmatprep.subr.mxu0 0.0
    %137 = vmatpush1.msra.mxu0 0.0
    %138 = vmatprep.subr.mxu0 0.0
    %139 = vmatpush1.msra.mxu0 %v96
    %140 = vmatprep.subr.mxu0 0.0
    %141 = vmatpush1.msra.mxu0 %v95
    %142 = vmatprep.subr.mxu0 0.0
    %143 = vmatpush1.msra.mxu0 %v94
    %144 = vmatprep.subr.mxu0 0.0
    %145 = vmatpush1.msra.mxu0 %v93
    %146 = vmatprep.subr.mxu0 0.0
    %147 = vmatpush1.msra.mxu0 %v92
    %148 = vmatprep.subr.mxu0 0.0
    %149 = vmatpush1.msra.mxu0 %v91
    %150 = vmatprep.subr.mxu0 0.0
    %151 = vmatpush1.msra.mxu0 %v90
    %152 = vmatprep.subr.mxu0 0.0
    %153 = vmatpush1.msra.mxu0 %v89
    %154 = vmatprep.subr.mxu0 0.0
    %155 = vmatpush2.msra.mxu0 0.0
    %156 = vmatprep.subr.mxu0 0.0
    %157 = vmatpush2.msra.mxu0 0.0
    %158 = vmatprep.subr.mxu0 0.0
    %159 = vmatpush2.msra.mxu0 0.0
    %160 = vmatprep.subr.mxu0 0.0
    %161 = vmatpush2.msra.mxu0 0.0
    %162 = vmatprep.subr.mxu0 0.0
    %163 = vmatpush2.msra.mxu0 0.0
    %164 = vmatprep.subr.mxu0 0.0
    %165 = vmatpush2.msra.mxu0 0.0
    %166 = vmatprep.subr.mxu0 0.0
    %167 = vmatpush2.msra.mxu0 0.0
    %168 = vmatprep.subr.mxu0 0.0
    %169 = vmatpush2.msra.mxu0 0.0
    %170 = vmatprep.subr.mxu0 0.0
    %171 = vmatpush2.msra.mxu0 0.0
    %172 = vmatprep.subr.mxu0 0.0
    %173 = vmatpush2.msra.mxu0 0.0
    %174 = vmatprep.subr.mxu0 0.0
    %175 = vmatpush2.msra.mxu0 0.0
    %176 = vmatprep.subr.mxu0 0.0
    %177 = vmatpush2.msra.mxu0 0.0
    %178 = vmatprep.subr.mxu0 0.0
    %179 = vmatpush2.msra.mxu0 0.0
    %180 = vmatprep.subr.mxu0 0.0
    %181 = vmatpush2.msra.mxu0 0.0
    %182 = vmatprep.subr.mxu0 0.0
    %183 = vmatpush2.msra.mxu0 0.0
    %184 = vmatprep.subr.mxu0 0.0
    %185 = vmatpush2.msra.mxu0 0.0
    %186 = vmatprep.mubr.f32.mxu0 0.0
    %187 = vmatmul.mubr.f32.gmra.mxu0 %v99
    %v188 = vpop.f32.mrf.mxu0
    %v189 = vadd.f32 0.0, %v188
    %v190 = vpop.f32.mrf.mxu0
    %191 = vmatprep.mubr.f32.mxu0 0.0
    %192 = vmatmul.mubr.f32.gmra.mxu0 %v102
    %v193 = vpop.f32.mrf.mxu0
    %v194 = vadd.f32 0.0, %v193
    %v195 = vpop.f32.mrf.mxu0
    %196 = vmatprep.mubr.f32.mxu0 0.0
    %197 = vmatmul.mubr.f32.gmra.mxu0 %v105
    %v198 = vpop.f32.mrf.mxu0
    %v199 = vadd.f32 0.0, %v198
    %v200 = vpop.f32.mrf.mxu0
    %201 = vmatprep.mubr.f32.mxu0 0.0
    %202 = vmatmul.mubr.f32.gmra.mxu0 %v108
    %v203 = vpop.f32.mrf.mxu0
    %v204 = vadd.f32 0.0, %v203
    %v205 = vpop.f32.mrf.mxu0
    %206 = vmatprep.mubr.f32.mxu0 0.0
    %207 = vmatmul.mubr.f32.gmra.mxu0 %v111
    %v208 = vpop.f32.mrf.mxu0
    %v209 = vadd.f32 0.0, %v208
    %v210 = vpop.f32.mrf.mxu0
    %211 = vmatprep.mubr.f32.mxu0 0.0
    %212 = vmatmul.mubr.f32.gmra.mxu0 %v114
    %v213 = vpop.f32.mrf.mxu0
    %v214 = vadd.f32 0.0, %v213
    %v215 = vpop.f32.mrf.mxu0
    %216 = vmatprep.mubr.f32.mxu0 0.0
    %217 = vmatmul.mubr.f32.gmra.mxu0 %v117
    %v218 = vpop.f32.mrf.mxu0
    %v219 = vadd.f32 0.0, %v218
    %v220 = vpop.f32.mrf.mxu0
    %221 = vmatprep.mubr.f32.mxu0 0.0
    %222 = vmatmul.mubr.f32.gmra.mxu0 %v120
    %v223 = vpop.f32.mrf.mxu0
    %v224 = vadd.f32 0.0, %v223
    %v225 = vpop.f32.mrf.mxu0
    %226 = vdwg.mxu0
    %v227 = vmul.f32 %v189, %v189
    %v228 = vmul.f32 %v194, %v194
    %v229 = vmul.f32 %v199, %v199
    %v230 = vmul.f32 %v204, %v204
    %v231 = vmul.f32 %v209, %v209
    %v232 = vmul.f32 %v214, %v214
    %v233 = vmul.f32 %v219, %v219
    %v234 = vmul.f32 %v224, %v224
    %243 = vrot.lane.b32.xlu0 %v227, 8
    %v244 = vpop.permute.xlu0 %243
    %245 = vrot.lane.b32.xlu0 %v228, 8
    %v246 = vpop.permute.xlu0 %245
    %247 = vrot.lane.b32.xlu0 %v229, 8
    %v248 = vpop.permute.xlu0 %247
    %249 = vrot.lane.b32.xlu0 %v230, 8
    %v250 = vpop.permute.xlu0 %249
    %251 = vrot.lane.b32.xlu0 %v231, 8
    %v252 = vpop.permute.xlu0 %251
    %253 = vrot.lane.b32.xlu0 %v232, 8
    %v254 = vpop.permute.xlu0 %253
    %255 = vrot.lane.b32.xlu0 %v233, 8
    %v256 = vpop.permute.xlu0 %255
    %257 = vrot.lane.b32.xlu0 %v234, 8
    %v258 = vpop.permute.xlu0 %257
    %v267 = vsub.f32 %v189, %v244
    %v268 = vsub.f32 %v194, %v246
    %v269 = vsub.f32 %v199, %v248
    %v270 = vsub.f32 %v204, %v250
    %v271 = vsub.f32 %v209, %v252
    %v272 = vsub.f32 %v214, %v254
    %v273 = vsub.f32 %v219, %v256
    %v274 = vsub.f32 %v224, %v258
    %v275 = vsub.f32 %v15, %v189
    %v276 = vsub.f32 %v16, %v194
    %v277 = vsub.f32 %v17, %v199
    %v278 = vsub.f32 %v18, %v204
    %v279 = vsub.f32 %v19, %v209
    %v280 = vsub.f32 %v20, %v214
    %v281 = vsub.f32 %v21, %v219
    %v282 = vsub.f32 %v22, %v224
    %v283 = vadd.f32 %v267, 1e-05
    %v284 = vadd.f32 %v268, 1e-05
    %v285 = vadd.f32 %v269, 1e-05
    %v286 = vadd.f32 %v270, 1e-05
    %v287 = vadd.f32 %v271, 1e-05
    %v288 = vadd.f32 %v272, 1e-05
    %v289 = vadd.f32 %v273, 1e-05
    %v290 = vadd.f32 %v274, 1e-05
    %v291 = vrsqrt.pop %v283
    %v292 = vrsqrt.pop %v284
    %v293 = vrsqrt.pop %v285
    %v294 = vrsqrt.pop %v286
    %v295 = vrsqrt.pop %v287
    %v296 = vrsqrt.pop %v288
    %v297 = vrsqrt.pop %v289
    %v298 = vrsqrt.pop %v290
    %307 = vrot.lane.b32.xlu0 %v291, 120
    %v308 = vpop.permute.xlu0 %307
    %309 = vrot.lane.b32.xlu0 %v292, 120
    %v310 = vpop.permute.xlu0 %309
    %311 = vrot.lane.b32.xlu0 %v293, 120
    %v312 = vpop.permute.xlu0 %311
    %313 = vrot.lane.b32.xlu0 %v294, 120
    %v314 = vpop.permute.xlu0 %313
    %315 = vrot.lane.b32.xlu0 %v295, 120
    %v316 = vpop.permute.xlu0 %315
    %317 = vrot.lane.b32.xlu0 %v296, 120
    %v318 = vpop.permute.xlu0 %317
    %319 = vrot.lane.b32.xlu0 %v297, 120
    %v320 = vpop.permute.xlu0 %319
    %321 = vrot.lane.b32.xlu0 %v298, 120
    %v322 = vpop.permute.xlu0 %321
    %v331 = vmul.f32 %v275, %v308
    %v332 = vmul.f32 %v276, %v310
    %v333 = vmul.f32 %v277, %v312
    %v334 = vmul.f32 %v278, %v314
    %v335 = vmul.f32 %v279, %v316
    %v336 = vmul.f32 %v280, %v318
    %v337 = vmul.f32 %v281, %v320
    %v338 = vmul.f32 %v282, %v322
    %v339 = vlaneseq
    %v340 = vshrl.u32 %v339, 7
    %v341 = vsub.s32 0, %v340
    %v342 = vrot.slane %v44, %v341
    %v343 = vmul.f32 %v331, %v342
    %v344 = vmul.f32 %v332, %v342
    %v345 = vmul.f32 %v333, %v342
    %v346 = vmul.f32 %v334, %v342
    %v347 = vmul.f32 %v335, %v342
    %v348 = vmul.f32 %v336, %v342
    %v349 = vmul.f32 %v337, %v342
    %v350 = vmul.f32 %v338, %v342
    %v351 = vlaneseq
    %v352 = vshrl.u32 %v351, 7
    %v353 = vsub.s32 0, %v352
    %v354 = vrot.slane %v45, %v353
    %v355 = vadd.f32 %v343, %v354
    %v356 = vadd.f32 %v344, %v354
    %v357 = vadd.f32 %v345, %v354
    %v358 = vadd.f32 %v346, %v354
    %v359 = vadd.f32 %v347, %v354
    %v360 = vadd.f32 %v348, %v354
    %v361 = vadd.f32 %v349, %v354
    %v362 = vadd.f32 %v350, %v354
    %v363 = vlaneseq
    %v364 = vshrl.u32 %v363, 7
    %v365 = vsub.s32 0, %v364
    %v366 = vrot.slane %v46, %v365
    %v368 = vsel %vm88, %v355, 0
    %v371 = vsel %vm88, %v356, 0
    %v374 = vsel %vm88, %v357, 0
    %v377 = vsel %vm88, %v358, 0
    %v380 = vsel %vm88, %v359, 0
    %v383 = vsel %vm88, %v360, 0
    %v386 = vsel %vm88, %v361, 0
    %v389 = vsel %vm88, %v362, 0
    %391 = vmatprep.subr.mxu0 0.0
    %392 = vmatpush1.msra.mxu0 0.0
    %393 = vmatprep.subr.mxu0 0.0
    %394 = vmatpush1.msra.mxu0 0.0
    %395 = vmatprep.subr.mxu0 0.0
    %396 = vmatpush1.msra.mxu0 0.0
    %397 = vmatprep.subr.mxu0 0.0
    %398 = vmatpush1.msra.mxu0 0.0
    %399 = vmatprep.subr.mxu0 0.0
    %400 = vmatpush1.msra.mxu0 0.0
    %401 = vmatprep.subr.mxu0 0.0
    %402 = vmatpush1.msra.mxu0 0.0
    %403 = vmatprep.subr.mxu0 0.0
    %404 = vmatpush1.msra.mxu0 0.0
    %405 = vmatprep.subr.mxu0 0.0
    %406 = vmatpush1.msra.mxu0 0.0
    %407 = vmatprep.subr.mxu0 0.0
    %408 = vmatpush1.msra.mxu0 0.0
    %409 = vmatprep.subr.mxu0 0.0
    %410 = vmatpush1.msra.mxu0 0.0
    %411 = vmatprep.subr.mxu0 0.0
    %412 = vmatpush1.msra.mxu0 0.0
    %413 = vmatprep.subr.mxu0 0.0
    %414 = vmatpush1.msra.mxu0 0.0
    %415 = vmatprep.subr.mxu0 0.0
    %416 = vmatpush1.msra.mxu0 0.0
    %417 = vmatprep.subr.mxu0 0.0
    %418 = vmatpush1.msra.mxu0 0.0
    %419 = vmatprep.subr.mxu0 0.0
    %420 = vmatpush1.msra.mxu0 0.0
    %421 = vmatprep.subr.mxu0 0.0
    %422 = vmatpush1.msra.mxu0 %v39
    %423 = vmatprep.subr.mxu0 0.0
    %424 = vmatpush2.msra.mxu0 0.0
    %425 = vmatprep.subr.mxu0 0.0
    %426 = vmatpush2.msra.mxu0 0.0
    %427 = vmatprep.subr.mxu0 0.0
    %428 = vmatpush2.msra.mxu0 0.0
    %429 = vmatprep.subr.mxu0 0.0
    %430 = vmatpush2.msra.mxu0 0.0
    %431 = vmatprep.subr.mxu0 0.0
    %432 = vmatpush2.msra.mxu0 0.0
    %433 = vmatprep.subr.mxu0 0.0
    %434 = vmatpush2.msra.mxu0 0.0
    %435 = vmatprep.subr.mxu0 0.0
    %436 = vmatpush2.msra.mxu0 0.0
    %437 = vmatprep.subr.mxu0 0.0
    %438 = vmatpush2.msra.mxu0 0.0
    %439 = vmatprep.subr.mxu0 0.0
    %440 = vmatpush2.msra.mxu0 0.0
    %441 = vmatprep.subr.mxu0 0.0
    %442 = vmatpush2.msra.mxu0 0.0
    %443 = vmatprep.subr.mxu0 0.0
    %444 = vmatpush2.msra.mxu0 0.0
    %445 = vmatprep.subr.mxu0 0.0
    %446 = vmatpush2.msra.mxu0 0.0
    %447 = vmatprep.subr.mxu0 0.0
    %448 = vmatpush2.msra.mxu0 0.0
    %449 = vmatprep.subr.mxu0 0.0
    %450 = vmatpush2.msra.mxu0 0.0
    %451 = vmatprep.subr.mxu0 0.0
    %452 = vmatpush2.msra.mxu0 0.0
    %453 = vmatprep.subr.mxu0 0.0
    %454 = vmatpush2.msra.mxu0 0.0
    %455 = vmatprep.mubr.f32.mxu0 0.0
    %456 = vmatmul.mubr.f32.gmra.mxu0 %v368
    %v457 = vpop.f32.mrf.mxu0
    %v458 = vadd.f32 %v366, %v457
    %v459 = vpop.f32.mrf.mxu0
    %460 = vmatprep.mubr.f32.mxu0 0.0
    %461 = vmatmul.mubr.f32.gmra.mxu0 %v371
    %v462 = vpop.f32.mrf.mxu0
    %v463 = vadd.f32 %v366, %v462
    %v464 = vpop.f32.mrf.mxu0
    %465 = vmatprep.mubr.f32.mxu0 0.0
    %466 = vmatmul.mubr.f32.gmra.mxu0 %v374
    %v467 = vpop.f32.mrf.mxu0
    %v468 = vadd.f32 %v366, %v467
    %v469 = vpop.f32.mrf.mxu0
    %470 = vmatprep.mubr.f32.mxu0 0.0
    %471 = vmatmul.mubr.f32.gmra.mxu0 %v377
    %v472 = vpop.f32.mrf.mxu0
    %v473 = vadd.f32 %v366, %v472
    %v474 = vpop.f32.mrf.mxu0
    %475 = vmatprep.mubr.f32.mxu0 0.0
    %476 = vmatmul.mubr.f32.gmra.mxu0 %v380
    %v477 = vpop.f32.mrf.mxu0
    %v478 = vadd.f32 %v366, %v477
    %v479 = vpop.f32.mrf.mxu0
    %480 = vmatprep.mubr.f32.mxu0 0.0
    %481 = vmatmul.mubr.f32.gmra.mxu0 %v383
    %v482 = vpop.f32.mrf.mxu0
    %v483 = vadd.f32 %v366, %v482
    %v484 = vpop.f32.mrf.mxu0
    %485 = vmatprep.mubr.f32.mxu0 0.0
    %486 = vmatmul.mubr.f32.gmra.mxu0 %v386
    %v487 = vpop.f32.mrf.mxu0
    %v488 = vadd.f32 %v366, %v487
    %v489 = vpop.f32.mrf.mxu0
    %490 = vmatprep.mubr.f32.mxu0 0.0
    %491 = vmatmul.mubr.f32.gmra.mxu0 %v389
    %v492 = vpop.f32.mrf.mxu0
    %v493 = vadd.f32 %v366, %v492
    %v494 = vpop.f32.mrf.mxu0
    %495 = vdwg.mxu0
    %vm496 = vcmask 130048
    %v498 = vsel %vm496, %v458, 0
    %v501 = vsel %vm496, %v463, 0
    %v504 = vsel %vm496, %v468, 0
    %v507 = vsel %vm496, %v473, 0
    %v510 = vsel %vm496, %v478, 0
    %v513 = vsel %vm496, %v483, 0
    %v516 = vsel %vm496, %v488, 0
    %v519 = vsel %vm496, %v493, 0
    %521 = vmatprep.subr.mxu0 0.0
    %522 = vmatpush1.xpose.msra.mxu0 0.0
    %523 = vmatprep.subr.mxu0 0.0
    %524 = vmatpush1.xpose.msra.mxu0 0.0
    %525 = vmatprep.subr.mxu0 0.0
    %526 = vmatpush1.xpose.msra.mxu0 0.0
    %527 = vmatprep.subr.mxu0 0.0
    %528 = vmatpush1.xpose.msra.mxu0 0.0
    %529 = vmatprep.subr.mxu0 0.0
    %530 = vmatpush1.xpose.msra.mxu0 0.0
    %531 = vmatprep.subr.mxu0 0.0
    %532 = vmatpush1.xpose.msra.mxu0 0.0
    %533 = vmatprep.subr.mxu0 0.0
    %534 = vmatpush1.xpose.msra.mxu0 0.0
    %535 = vmatprep.subr.mxu0 0.0
    %536 = vmatpush1.xpose.msra.mxu0 0.0
    %537 = vmatprep.subr.mxu0 0.0
    %538 = vmatpush1.xpose.msra.mxu0 %v519
    %539 = vmatprep.subr.mxu0 0.0
    %540 = vmatpush1.xpose.msra.mxu0 %v516
    %541 = vmatprep.subr.mxu0 0.0
    %542 = vmatpush1.xpose.msra.mxu0 %v513
    %543 = vmatprep.subr.mxu0 0.0
    %544 = vmatpush1.xpose.msra.mxu0 %v510
    %545 = vmatprep.subr.mxu0 0.0
    %546 = vmatpush1.xpose.msra.mxu0 %v507
    %547 = vmatprep.subr.mxu0 0.0
    %548 = vmatpush1.xpose.msra.mxu0 %v504
    %549 = vmatprep.subr.mxu0 0.0
    %550 = vmatpush1.xpose.msra.mxu0 %v501
    %551 = vmatprep.subr.mxu0 0.0
    %552 = vmatpush1.xpose.msra.mxu0 %v498
    %553 = vmatprep.subr.mxu0 0.0
    %554 = vmatpush2.xpose.msra.mxu0 0.0
    %555 = vmatprep.subr.mxu0 0.0
    %556 = vmatpush2.xpose.msra.mxu0 0.0
    %557 = vmatprep.subr.mxu0 0.0
    %558 = vmatpush2.xpose.msra.mxu0 0.0
    %559 = vmatprep.subr.mxu0 0.0
    %560 = vmatpush2.xpose.msra.mxu0 0.0
    %561 = vmatprep.subr.mxu0 0.0
    %562 = vmatpush2.xpose.msra.mxu0 0.0
    %563 = vmatprep.subr.mxu0 0.0
    %564 = vmatpush2.xpose.msra.mxu0 0.0
    %565 = vmatprep.subr.mxu0 0.0
    %566 = vmatpush2.xpose.msra.mxu0 0.0
    %567 = vmatprep.subr.mxu0 0.0
    %568 = vmatpush2.xpose.msra.mxu0 0.0
    %569 = vmatprep.subr.mxu0 0.0
    %570 = vmatpush2.xpose.msra.mxu0 0.0
    %571 = vmatprep.subr.mxu0 0.0
    %572 = vmatpush2.xpose.msra.mxu0 0.0
    %573 = vmatprep.subr.mxu0 0.0
    %574 = vmatpush2.xpose.msra.mxu0 0.0
    %575 = vmatprep.subr.mxu0 0.0
    %576 = vmatpush2.xpose.msra.mxu0 0.0
    %577 = vmatprep.subr.mxu0 0.0
    %578 = vmatpush2.xpose.msra.mxu0 0.0
    %579 = vmatprep.subr.mxu0 0.0
    %580 = vmatpush2.xpose.msra.mxu0 0.0
    %581 = vmatprep.subr.mxu0 0.0
    %582 = vmatpush2.xpose.msra.mxu0 0.0
    %583 = vmatprep.subr.mxu0 0.0
    %584 = vmatpush2.xpose.msra.mxu0 0.0
    %585 = vmatprep.mubr.f32.mxu0 0.0
    %586 = vmatmul.mubr.f32.gmra.mxu0 %v498
    %v587 = vpop.f32.mrf.mxu0
    %v588 = vadd.f32 0.0, %v587
    %v589 = vpop.f32.mrf.mxu0
    %590 = vmatprep.mubr.f32.mxu0 0.0
    %591 = vmatmul.mubr.f32.gmra.mxu0 %v501
    %v592 = vpop.f32.mrf.mxu0
    %v593 = vadd.f32 0.0, %v592
    %v594 = vpop.f32.mrf.mxu0
    %595 = vmatprep.mubr.f32.mxu0 0.0
    %596 = vmatmul.mubr.f32.gmra.mxu0 %v504
    %v597 = vpop.f32.mrf.mxu0
    %v598 = vadd.f32 0.0, %v597
    %v599 = vpop.f32.mrf.mxu0
    %600 = vmatprep.mubr.f32.mxu0 0.0
    %601 = vmatmul.mubr.f32.gmra.mxu0 %v507
    %v602 = vpop.f32.mrf.mxu0
    %v603 = vadd.f32 0.0, %v602
    %v604 = vpop.f32.mrf.mxu0
    %605 = vmatprep.mubr.f32.mxu0 0.0
    %606 = vmatmul.mubr.f32.gmra.mxu0 %v510
    %v607 = vpop.f32.mrf.mxu0
    %v608 = vadd.f32 0.0, %v607
    %v609 = vpop.f32.mrf.mxu0
    %610 = vmatprep.mubr.f32.mxu0 0.0
    %611 = vmatmul.mubr.f32.gmra.mxu0 %v513
    %v612 = vpop.f32.mrf.mxu0
    %v613 = vadd.f32 0.0, %v612
    %v614 = vpop.f32.mrf.mxu0
    %615 = vmatprep.mubr.f32.mxu0 0.0
    %616 = vmatmul.mubr.f32.gmra.mxu0 %v516
    %v617 = vpop.f32.mrf.mxu0
    %v618 = vadd.f32 0.0, %v617
    %v619 = vpop.f32.mrf.mxu0
    %620 = vmatprep.mubr.f32.mxu0 0.0
    %621 = vmatmul.mubr.f32.gmra.mxu0 %v519
    %v622 = vpop.f32.mrf.mxu0
    %v623 = vadd.f32 0.0, %v622
    %v624 = vpop.f32.mrf.mxu0
    %625 = vdwg.mxu0
    %v626 = vxor.u32 %v588, 2147483648
    %v627 = vxor.u32 %v593, 2147483648
    %v628 = vxor.u32 %v598, 2147483648
    %v629 = vxor.u32 %v603, 2147483648
    %v630 = vxor.u32 %v608, 2147483648
    %v631 = vxor.u32 %v613, 2147483648
    %v632 = vxor.u32 %v618, 2147483648
    %v633 = vxor.u32 %v623, 2147483648
    %v634 = vmul.f32 %v626, 1.442695
    %v635 = vpow.pop %v634
    %v636 = vmul.f32 %v627, 1.442695
    %v637 = vpow.pop %v636
    %v638 = vmul.f32 %v628, 1.442695
    %v639 = vpow.pop %v638
    %v640 = vmul.f32 %v629, 1.442695
    %v641 = vpow.pop %v640
    %v642 = vmul.f32 %v630, 1.442695
    %v643 = vpow.pop %v642
    %v644 = vmul.f32 %v631, 1.442695
    %v645 = vpow.pop %v644
    %v646 = vmul.f32 %v632, 1.442695
    %v647 = vpow.pop %v646
    %v648 = vmul.f32 %v633, 1.442695
    %v649 = vpow.pop %v648
    %v650 = vadd.f32 %v635, 1.0
    %v651 = vadd.f32 %v637, 1.0
    %v652 = vadd.f32 %v639, 1.0
    %v653 = vadd.f32 %v641, 1.0
    %v654 = vadd.f32 %v643, 1.0
    %v655 = vadd.f32 %v645, 1.0
    %v656 = vadd.f32 %v647, 1.0
    %v657 = vadd.f32 %v649, 1.0
    %v658 = vrcp.pop %v650
    %v659 = vmul.f32 1.0, %v658
    %v660 = vrcp.pop %v651
    %v661 = vmul.f32 1.0, %v660
    %v662 = vrcp.pop %v652
    %v663 = vmul.f32 1.0, %v662
    %v664 = vrcp.pop %v653
    %v665 = vmul.f32 1.0, %v664
    %v666 = vrcp.pop %v654
    %v667 = vmul.f32 1.0, %v666
    %v668 = vrcp.pop %v655
    %v669 = vmul.f32 1.0, %v668
    %v670 = vrcp.pop %v656
    %v671 = vmul.f32 1.0, %v670
    %v672 = vrcp.pop %v657
    %v673 = vmul.f32 1.0, %v672
    %v674 = vmax.f32 %v659, 0.1
    %v675 = vmax.f32 %v661, 0.1
    %v676 = vmax.f32 %v663, 0.1
    %v677 = vmax.f32 %v665, 0.1
    %v678 = vmax.f32 %v667, 0.1
    %v679 = vmax.f32 %v669, 0.1
    %v680 = vmax.f32 %v671, 0.1
    %v681 = vmax.f32 %v673, 0.1
    %v682 = vmul.f32 %v674, %v31
    %v683 = vmul.f32 %v675, %v32
    %v684 = vmul.f32 %v676, %v33
    %v685 = vmul.f32 %v677, %v34
    %v686 = vmul.f32 %v678, %v35
    %v687 = vmul.f32 %v679, %v36
    %v688 = vmul.f32 %v680, %v37
    %v689 = vmul.f32 %v681, %v38
    %v690 = vsel %vm97, %v682, 0.0
    %691 = vadd.xlane.f32.xlu0 %v690
    %v692 = vpop.xlane.xlu0 %691
    %v693 = vsel %vm97, %v683, 0.0
    %694 = vadd.xlane.f32.xlu0 %v693
    %v695 = vpop.xlane.xlu0 %694
    %v696 = vsel %vm97, %v684, 0.0
    %697 = vadd.xlane.f32.xlu0 %v696
    %v698 = vpop.xlane.xlu0 %697
    %v699 = vsel %vm97, %v685, 0.0
    %700 = vadd.xlane.f32.xlu0 %v699
    %v701 = vpop.xlane.xlu0 %700
    %v702 = vsel %vm97, %v686, 0.0
    %703 = vadd.xlane.f32.xlu0 %v702
    %v704 = vpop.xlane.xlu0 %703
    %v705 = vsel %vm97, %v687, 0.0
    %706 = vadd.xlane.f32.xlu0 %v705
    %v707 = vpop.xlane.xlu0 %706
    %v708 = vsel %vm97, %v688, 0.0
    %709 = vadd.xlane.f32.xlu0 %v708
    %v710 = vpop.xlane.xlu0 %709
    %v711 = vsel %vm97, %v689, 0.0
    %712 = vadd.xlane.f32.xlu0 %v711
    %v713 = vpop.xlane.xlu0 %712
    %v714 = vadd.f32 %v692, 1.0
    %v715 = vadd.f32 %v695, 1.0
    %v716 = vadd.f32 %v698, 1.0
    %v717 = vadd.f32 %v701, 1.0
    %v718 = vadd.f32 %v704, 1.0
    %v719 = vadd.f32 %v707, 1.0
    %v720 = vadd.f32 %v710, 1.0
    %v721 = vadd.f32 %v713, 1.0
    %v722 = vrsqrt.pop %v714
    %v723 = vrsqrt.pop %v715
    %v724 = vrsqrt.pop %v716
    %v725 = vrsqrt.pop %v717
    %v726 = vrsqrt.pop %v718
    %v727 = vrsqrt.pop %v719
    %v728 = vrsqrt.pop %v720
    %v729 = vrsqrt.pop %v721
    %v730 = vmul.f32 %v722, %v458
    %v731 = vmul.f32 %v723, %v463
    %v732 = vmul.f32 %v724, %v468
    %v733 = vmul.f32 %v725, %v473
    %v734 = vmul.f32 %v726, %v478
    %v735 = vmul.f32 %v727, %v483
    %v736 = vmul.f32 %v728, %v488
    %v737 = vmul.f32 %v729, %v493
    %746 = vrot.lane.b32.xlu0 %v730, 112
    %v747 = vpop.permute.xlu0 %746
    %748 = vrot.lane.b32.xlu0 %v731, 112
    %v749 = vpop.permute.xlu0 %748
    %750 = vrot.lane.b32.xlu0 %v732, 112
    %v751 = vpop.permute.xlu0 %750
    %752 = vrot.lane.b32.xlu0 %v733, 112
    %v753 = vpop.permute.xlu0 %752
    %754 = vrot.lane.b32.xlu0 %v734, 112
    %v755 = vpop.permute.xlu0 %754
    %756 = vrot.lane.b32.xlu0 %v735, 112
    %v757 = vpop.permute.xlu0 %756
    %758 = vrot.lane.b32.xlu0 %v736, 112
    %v759 = vpop.permute.xlu0 %758
    %760 = vrot.lane.b32.xlu0 %v737, 112
    %v761 = vpop.permute.xlu0 %760
    %v771 = vsel %vm97, %v682, 0
    %v774 = vsel %vm97, %v683, 0
    %v777 = vsel %vm97, %v684, 0
    %v780 = vsel %vm97, %v685, 0
    %v783 = vsel %vm97, %v686, 0
    %v786 = vsel %vm97, %v687, 0
    %v789 = vsel %vm97, %v688, 0
    %v792 = vsel %vm97, %v689, 0
    %794 = vmatprep.subr.mxu0 0.0
    %795 = vmatpush1.msra.mxu0 0.0
    %796 = vmatprep.subr.mxu0 0.0
    %797 = vmatpush1.msra.mxu0 0.0
    %798 = vmatprep.subr.mxu0 0.0
    %799 = vmatpush1.msra.mxu0 0.0
    %800 = vmatprep.subr.mxu0 0.0
    %801 = vmatpush1.msra.mxu0 0.0
    %802 = vmatprep.subr.mxu0 0.0
    %803 = vmatpush1.msra.mxu0 0.0
    %804 = vmatprep.subr.mxu0 0.0
    %805 = vmatpush1.msra.mxu0 0.0
    %806 = vmatprep.subr.mxu0 0.0
    %807 = vmatpush1.msra.mxu0 0.0
    %808 = vmatprep.subr.mxu0 0.0
    %809 = vmatpush1.msra.mxu0 0.0
    %810 = vmatprep.subr.mxu0 0.0
    %811 = vmatpush1.msra.mxu0 %v761
    %812 = vmatprep.subr.mxu0 0.0
    %813 = vmatpush1.msra.mxu0 %v759
    %814 = vmatprep.subr.mxu0 0.0
    %815 = vmatpush1.msra.mxu0 %v757
    %816 = vmatprep.subr.mxu0 0.0
    %817 = vmatpush1.msra.mxu0 %v755
    %818 = vmatprep.subr.mxu0 0.0
    %819 = vmatpush1.msra.mxu0 %v753
    %820 = vmatprep.subr.mxu0 0.0
    %821 = vmatpush1.msra.mxu0 %v751
    %822 = vmatprep.subr.mxu0 0.0
    %823 = vmatpush1.msra.mxu0 %v749
    %824 = vmatprep.subr.mxu0 0.0
    %825 = vmatpush1.msra.mxu0 %v747
    %826 = vmatprep.subr.mxu0 0.0
    %827 = vmatpush2.msra.mxu0 0.0
    %828 = vmatprep.subr.mxu0 0.0
    %829 = vmatpush2.msra.mxu0 0.0
    %830 = vmatprep.subr.mxu0 0.0
    %831 = vmatpush2.msra.mxu0 0.0
    %832 = vmatprep.subr.mxu0 0.0
    %833 = vmatpush2.msra.mxu0 0.0
    %834 = vmatprep.subr.mxu0 0.0
    %835 = vmatpush2.msra.mxu0 0.0
    %836 = vmatprep.subr.mxu0 0.0
    %837 = vmatpush2.msra.mxu0 0.0
    %838 = vmatprep.subr.mxu0 0.0
    %839 = vmatpush2.msra.mxu0 0.0
    %840 = vmatprep.subr.mxu0 0.0
    %841 = vmatpush2.msra.mxu0 0.0
    %842 = vmatprep.subr.mxu0 0.0
    %843 = vmatpush2.msra.mxu0 0.0
    %844 = vmatprep.subr.mxu0 0.0
    %845 = vmatpush2.msra.mxu0 0.0
    %846 = vmatprep.subr.mxu0 0.0
    %847 = vmatpush2.msra.mxu0 0.0
    %848 = vmatprep.subr.mxu0 0.0
    %849 = vmatpush2.msra.mxu0 0.0
    %850 = vmatprep.subr.mxu0 0.0
    %851 = vmatpush2.msra.mxu0 0.0
    %852 = vmatprep.subr.mxu0 0.0
    %853 = vmatpush2.msra.mxu0 0.0
    %854 = vmatprep.subr.mxu0 0.0
    %855 = vmatpush2.msra.mxu0 0.0
    %856 = vmatprep.subr.mxu0 0.0
    %857 = vmatpush2.msra.mxu0 0.0
    %858 = vmatprep.mubr.f32.mxu0 0.0
    %859 = vmatmul.mubr.f32.gmra.mxu0 %v771
    %v860 = vpop.f32.mrf.mxu0
    %v861 = vadd.f32 %v747, %v860
    %v862 = vpop.f32.mrf.mxu0
    %863 = vmatprep.mubr.f32.mxu0 0.0
    %864 = vmatmul.mubr.f32.gmra.mxu0 %v774
    %v865 = vpop.f32.mrf.mxu0
    %v866 = vadd.f32 %v749, %v865
    %v867 = vpop.f32.mrf.mxu0
    %868 = vmatprep.mubr.f32.mxu0 0.0
    %869 = vmatmul.mubr.f32.gmra.mxu0 %v777
    %v870 = vpop.f32.mrf.mxu0
    %v871 = vadd.f32 %v751, %v870
    %v872 = vpop.f32.mrf.mxu0
    %873 = vmatprep.mubr.f32.mxu0 0.0
    %874 = vmatmul.mubr.f32.gmra.mxu0 %v780
    %v875 = vpop.f32.mrf.mxu0
    %v876 = vadd.f32 %v753, %v875
    %v877 = vpop.f32.mrf.mxu0
    %878 = vmatprep.mubr.f32.mxu0 0.0
    %879 = vmatmul.mubr.f32.gmra.mxu0 %v783
    %v880 = vpop.f32.mrf.mxu0
    %v881 = vadd.f32 %v755, %v880
    %v882 = vpop.f32.mrf.mxu0
    %883 = vmatprep.mubr.f32.mxu0 0.0
    %884 = vmatmul.mubr.f32.gmra.mxu0 %v786
    %v885 = vpop.f32.mrf.mxu0
    %v886 = vadd.f32 %v757, %v885
    %v887 = vpop.f32.mrf.mxu0
    %888 = vmatprep.mubr.f32.mxu0 0.0
    %889 = vmatmul.mubr.f32.gmra.mxu0 %v789
    %v890 = vpop.f32.mrf.mxu0
    %v891 = vadd.f32 %v759, %v890
    %v892 = vpop.f32.mrf.mxu0
    %893 = vmatprep.mubr.f32.mxu0 0.0
    %894 = vmatmul.mubr.f32.gmra.mxu0 %v792
    %v895 = vpop.f32.mrf.mxu0
    %v896 = vadd.f32 %v761, %v895
    %v897 = vpop.f32.mrf.mxu0
    %898 = vdwg.mxu0
    %v899 = vmul.f32 %v722, %v861
    %v900 = vmul.f32 %v723, %v866
    %v901 = vmul.f32 %v724, %v871
    %v902 = vmul.f32 %v725, %v876
    %v903 = vmul.f32 %v726, %v881
    %v904 = vmul.f32 %v727, %v886
    %v905 = vmul.f32 %v728, %v891
    %v906 = vmul.f32 %v729, %v896
    %v907 = vmax.f32 %v899, 0.0
    %v908 = vmax.f32 %v900, 0.0
    %v909 = vmax.f32 %v901, 0.0
    %v910 = vmax.f32 %v902, 0.0
    %v911 = vmax.f32 %v903, 0.0
    %v912 = vmax.f32 %v904, 0.0
    %v913 = vmax.f32 %v905, 0.0
    %v914 = vmax.f32 %v906, 0.0
    %917 = vrot.lane.b32.xlu0 %v909, 8
    %v918 = vpop.permute.xlu0 %917
    %919 = vrot.lane.b32.xlu0 %v910, 8
    %v920 = vpop.permute.xlu0 %919
    %925 = vrot.lane.b32.xlu0 %v911, 16
    %v926 = vpop.permute.xlu0 %925
    %927 = vrot.lane.b32.xlu0 %v912, 16
    %v928 = vpop.permute.xlu0 %927
    %933 = vrot.lane.b32.xlu0 %v913, 24
    %v934 = vpop.permute.xlu0 %933
    %935 = vrot.lane.b32.xlu0 %v914, 24
    %v936 = vpop.permute.xlu0 %935
    %v939 = vsel %vm88, %v907, %v918
    %v940 = vsel %vm88, %v908, %v920
    %v941 = vsel %vm496, %v939, %v926
    %v942 = vsel %vm496, %v940, %v928
    %vm943 = vcmask 195584
    %v944 = vsel %vm943, %v941, %v934
    %v945 = vsel %vm943, %v942, %v936
    %v946 = vlaneseq
    %v947 = vshrl.u32 %v946, 7
    %v948 = vsub.s32 0, %v947
    %v949 = vrot.slane %v47, %v948
    %vm950 = vcmask 261120
    %v952 = vsel %vm950, %v944, 0
    %v955 = vsel %vm950, %v945, 0
    %957 = vmatprep.subr.mxu0 0.0
    %958 = vmatpush1.msra.mxu0 0.0
    %959 = vmatprep.subr.mxu0 0.0
    %960 = vmatpush1.msra.mxu0 0.0
    %961 = vmatprep.subr.mxu0 0.0
    %962 = vmatpush1.msra.mxu0 0.0
    %963 = vmatprep.subr.mxu0 0.0
    %964 = vmatpush1.msra.mxu0 0.0
    %965 = vmatprep.subr.mxu0 0.0
    %966 = vmatpush1.msra.mxu0 0.0
    %967 = vmatprep.subr.mxu0 0.0
    %968 = vmatpush1.msra.mxu0 0.0
    %969 = vmatprep.subr.mxu0 0.0
    %970 = vmatpush1.msra.mxu0 0.0
    %971 = vmatprep.subr.mxu0 0.0
    %972 = vmatpush1.msra.mxu0 0.0
    %973 = vmatprep.subr.mxu0 0.0
    %974 = vmatpush1.msra.mxu0 0.0
    %975 = vmatprep.subr.mxu0 0.0
    %976 = vmatpush1.msra.mxu0 0.0
    %977 = vmatprep.subr.mxu0 0.0
    %978 = vmatpush1.msra.mxu0 0.0
    %979 = vmatprep.subr.mxu0 0.0
    %980 = vmatpush1.msra.mxu0 0.0
    %981 = vmatprep.subr.mxu0 0.0
    %982 = vmatpush1.msra.mxu0 %v43
    %983 = vmatprep.subr.mxu0 0.0
    %984 = vmatpush1.msra.mxu0 %v42
    %985 = vmatprep.subr.mxu0 0.0
    %986 = vmatpush1.msra.mxu0 %v41
    %987 = vmatprep.subr.mxu0 0.0
    %988 = vmatpush1.msra.mxu0 %v40
    %989 = vmatprep.subr.mxu0 0.0
    %990 = vmatpush2.msra.mxu0 0.0
    %991 = vmatprep.subr.mxu0 0.0
    %992 = vmatpush2.msra.mxu0 0.0
    %993 = vmatprep.subr.mxu0 0.0
    %994 = vmatpush2.msra.mxu0 0.0
    %995 = vmatprep.subr.mxu0 0.0
    %996 = vmatpush2.msra.mxu0 0.0
    %997 = vmatprep.subr.mxu0 0.0
    %998 = vmatpush2.msra.mxu0 0.0
    %999 = vmatprep.subr.mxu0 0.0
    %1000 = vmatpush2.msra.mxu0 0.0
    %1001 = vmatprep.subr.mxu0 0.0
    %1002 = vmatpush2.msra.mxu0 0.0
    %1003 = vmatprep.subr.mxu0 0.0
    %1004 = vmatpush2.msra.mxu0 0.0
    %1005 = vmatprep.subr.mxu0 0.0
    %1006 = vmatpush2.msra.mxu0 0.0
    %1007 = vmatprep.subr.mxu0 0.0
    %1008 = vmatpush2.msra.mxu0 0.0
    %1009 = vmatprep.subr.mxu0 0.0
    %1010 = vmatpush2.msra.mxu0 0.0
    %1011 = vmatprep.subr.mxu0 0.0
    %1012 = vmatpush2.msra.mxu0 0.0
    %1013 = vmatprep.subr.mxu0 0.0
    %1014 = vmatpush2.msra.mxu0 0.0
    %1015 = vmatprep.subr.mxu0 0.0
    %1016 = vmatpush2.msra.mxu0 0.0
    %1017 = vmatprep.subr.mxu0 0.0
    %1018 = vmatpush2.msra.mxu0 0.0
    %1019 = vmatprep.subr.mxu0 0.0
    %1020 = vmatpush2.msra.mxu0 0.0
    %1021 = vmatprep.mubr.f32.mxu0 0.0
    %1022 = vmatmul.mubr.f32.gmra.mxu0 %v952
    %v1023 = vpop.f32.mrf.mxu0
    %v1024 = vadd.f32 %v949, %v1023
    %v1025 = vpop.f32.mrf.mxu0
    %1026 = vmatprep.mubr.f32.mxu0 0.0
    %1027 = vmatmul.mubr.f32.gmra.mxu0 %v955
    %v1028 = vpop.f32.mrf.mxu0
    %v1029 = vadd.f32 %v949, %v1028
    %v1030 = vpop.f32.mrf.mxu0
    %1031 = vdwg.mxu0
    %v1032 = vmax.f32 %v1024, 0.0
    %v1033 = vmax.f32 %v1029, 0.0
    %1034 = vst.msk [vmem:[#allocation2] sm:$0xff] %vm950, %v1032
    %1035 = vst.msk [vmem:[#allocation2 + $0x8] sm:$0xff] %vm950, %v1033
    // Predicated region
    $region14: #{tigcn_forward.1} parent=1 // pred_check
      _
    $region15: #{tigcn_forward.1} parent=1 // pred_check_branch
      %1037 = sbr.rel (0) target = $region17
    $region16: #{tigcn_forward.1} parent=1 // pred_region
      %s1039 = ssub.s32 256, 256
      %1040 = vsyncadd [#allocation3], %s1039
      %s1041 = sshll.u32 [#allocation2], 4
      %s1042 = int_to_ptr.vmem [resolvable:$true] %s1041
      %1047 = dma.vmem_to_hbm [thread:$0]  %s1042, 256, %s3, [#allocation3], 128, 128, 8
    $region17: #{tigcn_forward.1} parent=1 // pred_fallthru
      _
    // Predicated region
    $region18: #{tigcn_forward.1} parent=1 // pred_check
      _
    $region19: #{tigcn_forward.1} parent=1 // pred_check_branch
      %1049 = sbr.rel (0) target = $region21
    $region20: #{tigcn_forward.1} parent=1 // pred_region
      %1050 = dma.done [#allocation3], 256
    $region21: #{tigcn_forward.1} parent=1 // pred_fallthru
      _
    %1051 = vsyncpa [#allocation3], 1

</llo_original>
